<compile_context>
chip_gen: v5e
topology: v5e:2x2
jax: 0.10.0
libtpu: 0.0.40
codegen_flags: <defaults>
</compile_context>

<pallas_src>
import jax
import jax.numpy as jnp
from jax.experimental import pallas as pl
from jax.experimental.pallas import tpu as pltpu


def scoring_kernel(h_ref, r_ref, t_ref, w1_ref, b1_ref, w2_ref, b2_ref, o_ref):
    # h/r/t_ref : (TILE_B, D) f32   -- streamed batch tiles (bf16 cast in-kernel)
    # w1_ref    : (3, D, D)  bf16   -- three blocks of W1.T, VMEM-resident
    # b1_ref    : (1, D) f32, w2_ref: (D, 1) f32 -- resident
    # b2_ref    : (1,) f32 in SMEM  -- scalar bias
    # o_ref     : (1, TILE_B) f32   -- lane-dense scores (batch on lanes)
    cd = w1_ref.dtype

    # z = cat([h,r,t]) @ W1.T  ==  h@W1h + r@W1r + t@W1t    (f32 accumulation).
    # (Inputs arrive as three tiles; three dots + two f32 adds beats paying a
    #  VMEM concat to form a single K=3D operand.)
    z = (jnp.dot(h_ref[...].astype(cd), w1_ref[0], preferred_element_type=jnp.float32)
         + jnp.dot(r_ref[...].astype(cd), w1_ref[1], preferred_element_type=jnp.float32)
         + jnp.dot(t_ref[...].astype(cd), w1_ref[2], preferred_element_type=jnp.float32))

    # bias + relu in f32
    a = jnp.maximum(z + b1_ref[...], 0.0)                      # (TILE_B, D)

    # Layer 2 on XLU/VPU (MXU idle): bf16 transpose halves XLU traffic, then
    # multiply by the f32 W2 column and reduce over the hidden (sublane) axis.
    at = a.astype(cd).T                                        # (D, TILE_B)
    o_ref[...] = (jnp.sum(at * w2_ref[...], axis=0, keepdims=True)
                  + b2_ref[0])                                 # (1, TILE_B)


def _resident_spec(shape):
    """Constant-index (VMEM-resident) block; single-buffered when supported."""
    index_map = lambda i: (0,) * len(shape)
    try:
        return pl.BlockSpec(shape, index_map, pipeline_mode=pl.Buffered(1))
    except TypeError:  # older jax without pipeline_mode kwarg
        return pl.BlockSpec(shape, index_map)


def scoring_function(h, r, t, params, *, block_b=512, compute_dtype=jnp.bfloat16):
    """params = (W1, b1, W2, b2) in PyTorch nn.Linear layout:
       W1: (D, 3D), b1: (D,), W2: (1, D), b2: (1,).  Returns (B, 1) f32 scores."""
    W1, b1, W2, b2 = params
    B, D = h.shape
    D_pad = pl.cdiv(D, 128) * 128

    # Tile selection: large tiles amortize per-step overhead; keep >= 2 grid
    # steps when possible so the parallel axis can use both v7x TensorCores.
    bb = min(block_b, 1024 if D_pad <= 512 else 512)
    bb = max(128, (bb // 128) * 128)
    while bb > 128 and pl.cdiv(B, bb) < 2:
        bb = max(128, ((bb // 2) // 128) * 128)
    grid_b = pl.cdiv(B, bb)
    B_pad = grid_b * bb

    # Activations stay f32 and un-packed (no extra HBM pass); pad only if needed.
    def pad2(x):
        pb, pd = B_pad - x.shape[0], D_pad - x.shape[1]
        return jnp.pad(x, ((0, pb), (0, pd))) if (pb or pd) else x
    hp, rp, tp = pad2(h), pad2(r), pad2(t)

    # Weights: three (D, D) blocks of W1.T packed as one resident bf16 array.
    w1t = W1.T.reshape(3, D, D)
    if D_pad != D:
        w1t = jnp.pad(w1t, ((0, 0), (0, D_pad - D), (0, D_pad - D)))
    w1t = w1t.astype(compute_dtype)
    b1p = jnp.pad(b1.reshape(1, D), ((0, 0), (0, D_pad - D))).astype(jnp.float32)
    w2c = jnp.pad(W2.reshape(1, D), ((0, 0), (0, D_pad - D))).T.astype(jnp.float32)
    b2p = b2.reshape(1).astype(jnp.float32)

    # VMEM limit with headroom below physical capacity (64 MiB/TC on v7x,
    # 128 MiB on v5e/v6e); conservative 48 MiB fallback.
    try:
        vmem_cap = int(pltpu.get_tpu_info().vmem_capacity_bytes)
    except Exception:
        vmem_cap = 64 * 1024 * 1024
    vmem_limit = int(max(32 * 1024 * 1024,
                         min(vmem_cap - 16 * 1024 * 1024, 112 * 1024 * 1024)))

    itemsize = jnp.dtype(compute_dtype).itemsize
    flops = 2 * B_pad * (3 * D_pad) * D_pad + 2 * B_pad * D_pad
    bytes_accessed = (3 * B_pad * D_pad * 4 + w1t.size * itemsize
                      + (b1p.size + w2c.size + b2p.size) * 4 + B_pad * 4)

    out = pl.pallas_call(
        scoring_kernel,
        out_shape=jax.ShapeDtypeStruct((1, B_pad), jnp.float32),
        grid=(grid_b,),
        in_specs=[
            # activations: one (bb, D) batch tile per grid step, streamed
            pl.BlockSpec((bb, D_pad), lambda i: (i, 0)),
            pl.BlockSpec((bb, D_pad), lambda i: (i, 0)),
            pl.BlockSpec((bb, D_pad), lambda i: (i, 0)),
            # weights / biases: constant block index => resident, DMA'd once
            _resident_spec((3, D_pad, D_pad)),
            _resident_spec((1, D_pad)),
            _resident_spec((D_pad, 1)),
            # scalar bias in SMEM
            pl.BlockSpec(memory_space=pltpu.MemorySpace.SMEM),
        ],
        # lane-dense output: each grid step writes a distinct bb-lane chunk
        out_specs=pl.BlockSpec((1, bb), lambda i: (0, i)),
        compiler_params=pltpu.CompilerParams(
            dimension_semantics=("parallel",),
            vmem_limit_bytes=vmem_limit,
        ),
        cost_estimate=pl.CostEstimate(flops=int(flops), transcendentals=0,
                                      bytes_accessed=int(bytes_accessed)),
    )(hp, rp, tp, w1t, b1p, w2c, b2p)

    return out[0, :B].reshape(B, 1)


def init_params(key, embedding_dim):
    D = embedding_dim
    k = jax.random.split(key, 4)
    # PyTorch nn.Linear default init: U(-1/sqrt(fan_in), 1/sqrt(fan_in))
    bound1 = 1.0 / jnp.sqrt(3.0 * D)
    bound2 = 1.0 / jnp.sqrt(float(D))
    W1 = jax.random.uniform(k[0], (D, 3 * D), jnp.float32, -bound1, bound1)
    b1 = jax.random.uniform(k[1], (D,), jnp.float32, -bound1, bound1)
    W2 = jax.random.uniform(k[2], (1, D), jnp.float32, -bound2, bound2)
    b2 = jax.random.uniform(k[3], (1,), jnp.float32, -bound2, bound2)
    return (W1, b1, W2, b2)


def reference(h, r, t, params):
    W1, b1, W2, b2 = params
    x = jnp.concatenate([h, r, t], axis=1)
    x = jnp.maximum(x @ W1.T + b1, 0.0)
    return x @ W2.T + b2


if __name__ == "__main__":
    # Small demo consistent with the module: batch=512, embedding_dim=128
    # (exercises a 2-step parallel batch grid with a 256-row tile).
    B, D = 512, 128
    key = jax.random.PRNGKey(0)
    kh, kr, kt, kp = jax.random.split(key, 4)
    h = jax.random.normal(kh, (B, D), jnp.float32)
    r = jax.random.normal(kr, (B, D), jnp.float32)
    t = jax.random.normal(kt, (B, D), jnp.float32)
    params = init_params(kp, D)

    out = jax.block_until_ready(scoring_function(h, r, t, params))
    ref = reference(h, r, t, params)

    assert out.shape == (B, 1), out.shape
    # bf16 weights/inputs with f32 accumulation vs f32 reference.
    err = float(jnp.max(jnp.abs(out - ref)))
    assert jnp.allclose(out, ref, atol=2e-2, rtol=2e-2), err
    print("KERNEL_OK")
</pallas_src>

<mosaic_0001>
module attributes {stable_mosaic.version = 11 : i64} {
  func.func @scoring_kernel(%arg0: i32, %arg1: memref<256x128xf32, #tpu.memory_space<vmem>>, %arg2: memref<256x128xf32, #tpu.memory_space<vmem>>, %arg3: memref<256x128xf32, #tpu.memory_space<vmem>>, %arg4: memref<3x128x128xbf16, #tpu.memory_space<vmem>>, %arg5: memref<1x128xf32, #tpu.memory_space<vmem>>, %arg6: memref<128x1xf32, #tpu.memory_space<vmem>>, %arg7: memref<1xf32, #tpu.memory_space<smem>>, %arg8: memref<1x256xf32, #tpu.memory_space<vmem>>) attributes {dimension_semantics = [#tpu.dimension_semantics<parallel>], iteration_bounds = array<i64: 2>, scalar_prefetch = 0 : i64, scratch_operands = 0 : i64, tpu.core_type = #tpu.core_type<tc>, window_params = [{transform_indices = @transform_0, window_bounds = array<i64: 256, 128>}, {transform_indices = @transform_1, window_bounds = array<i64: 256, 128>}, {transform_indices = @transform_2, window_bounds = array<i64: 256, 128>}, {pipeline_mode = #tpu.pipeline_mode<synchronous>, transform_indices = @transform_3, window_bounds = array<i64: 3, 128, 128>}, {pipeline_mode = #tpu.pipeline_mode<synchronous>, transform_indices = @transform_4, window_bounds = array<i64: 1, 128>}, {pipeline_mode = #tpu.pipeline_mode<synchronous>, transform_indices = @transform_5, window_bounds = array<i64: 128, 1>}, {transform_indices = @transform_6, window_bounds = array<i64: 1>}, {transform_indices = @transform_7, window_bounds = array<i64: 1, 256>}]} {
    %c0 = arith.constant 0 : index
    %c0_0 = arith.constant 0 : index
    %0 = vector.load %arg1[%c0, %c0_0] : memref<256x128xf32, #tpu.memory_space<vmem>>, vector<256x128xf32>
    %1 = arith.truncf %0 : vector<256x128xf32> to vector<256x128xbf16>
    %c0_1 = arith.constant 0 : index
    %c0_2 = arith.constant 0 : index
    %c0_3 = arith.constant 0 : index
    %2 = vector.load %arg4[%c0_1, %c0_2, %c0_3] : memref<3x128x128xbf16, #tpu.memory_space<vmem>>, vector<1x128x128xbf16>
    %3 = vector.shape_cast %2 : vector<1x128x128xbf16> to vector<128x128xbf16>
    %cst = arith.constant dense<0.000000e+00> : vector<256x128xf32>
    %4 = tpu.matmul %1, %3, %cst {dimension_numbers = #tpu.dot_dimension_numbers<[1], [0], [0], [1], [0, 0, 1, 1], [], []>} : vector<256x128xbf16>, vector<128x128xbf16>, vector<256x128xf32> -> vector<256x128xf32>
    %c0_4 = arith.constant 0 : index
    %c0_5 = arith.constant 0 : index
    %5 = vector.load %arg2[%c0_4, %c0_5] : memref<256x128xf32, #tpu.memory_space<vmem>>, vector<256x128xf32>
    %6 = arith.truncf %5 : vector<256x128xf32> to vector<256x128xbf16>
    %c1 = arith.constant 1 : index
    %c0_6 = arith.constant 0 : index
    %c0_7 = arith.constant 0 : index
    %7 = vector.load %arg4[%c1, %c0_6, %c0_7] : memref<3x128x128xbf16, #tpu.memory_space<vmem>>, vector<1x128x128xbf16>
    %8 = vector.shape_cast %7 : vector<1x128x128xbf16> to vector<128x128xbf16>
    %cst_8 = arith.constant dense<0.000000e+00> : vector<256x128xf32>
    %9 = tpu.matmul %6, %8, %cst_8 {dimension_numbers = #tpu.dot_dimension_numbers<[1], [0], [0], [1], [0, 0, 1, 1], [], []>} : vector<256x128xbf16>, vector<128x128xbf16>, vector<256x128xf32> -> vector<256x128xf32>
    %10 = arith.addf %4, %9 : vector<256x128xf32>
    %c0_9 = arith.constant 0 : index
    %c0_10 = arith.constant 0 : index
    %11 = vector.load %arg3[%c0_9, %c0_10] : memref<256x128xf32, #tpu.memory_space<vmem>>, vector<256x128xf32>
    %12 = arith.truncf %11 : vector<256x128xf32> to vector<256x128xbf16>
    %c2 = arith.constant 2 : index
    %c0_11 = arith.constant 0 : index
    %c0_12 = arith.constant 0 : index
    %13 = vector.load %arg4[%c2, %c0_11, %c0_12] : memref<3x128x128xbf16, #tpu.memory_space<vmem>>, vector<1x128x128xbf16>
    %14 = vector.shape_cast %13 : vector<1x128x128xbf16> to vector<128x128xbf16>
    %cst_13 = arith.constant dense<0.000000e+00> : vector<256x128xf32>
    %15 = tpu.matmul %12, %14, %cst_13 {dimension_numbers = #tpu.dot_dimension_numbers<[1], [0], [0], [1], [0, 0, 1, 1], [], []>} : vector<256x128xbf16>, vector<128x128xbf16>, vector<256x128xf32> -> vector<256x128xf32>
    %16 = arith.addf %10, %15 : vector<256x128xf32>
    %c0_14 = arith.constant 0 : index
    %c0_15 = arith.constant 0 : index
    %17 = vector.load %arg5[%c0_14, %c0_15] : memref<1x128xf32, #tpu.memory_space<vmem>>, vector<1x128xf32>
    %18 = vector.broadcast %17 : vector<1x128xf32> to vector<256x128xf32>
    %19 = arith.addf %16, %18 : vector<256x128xf32>
    %cst_16 = arith.constant 0.000000e+00 : f32
    %20 = vector.broadcast %cst_16 : f32 to vector<256x128xf32>
    %21 = arith.maximumf %19, %20 : vector<256x128xf32>
    %22 = arith.truncf %21 : vector<256x128xf32> to vector<256x128xbf16>
    %23 = tpu.transpose %22, [1, 0] : vector<256x128xbf16> -> vector<128x256xbf16>
    %c0_17 = arith.constant 0 : index
    %c0_18 = arith.constant 0 : index
    %24 = vector.load %arg6[%c0_17, %c0_18] : memref<128x1xf32, #tpu.memory_space<vmem>>, vector<128x1xf32>
    %25 = arith.extf %23 : vector<128x256xbf16> to vector<128x256xf32>
    %26 = vector.broadcast %24 : vector<128x1xf32> to vector<128x256xf32>
    %27 = arith.mulf %25, %26 : vector<128x256xf32>
    %cst_19 = arith.constant dense<0.000000e+00> : vector<256xf32>
    %28 = vector.multi_reduction <add>, %27, %cst_19 [0] : vector<128x256xf32> to vector<256xf32>
    %29 = vector.shape_cast %28 : vector<256xf32> to vector<1x256xf32>
    %c0_20 = arith.constant 0 : index
    %30 = memref.load %arg7[%c0_20] : memref<1xf32, #tpu.memory_space<smem>>
    %31 = vector.broadcast %30 : f32 to vector<1x256xf32>
    %32 = arith.addf %29, %31 : vector<1x256xf32>
    %c0_21 = arith.constant 0 : index
    %c0_22 = arith.constant 0 : index
    %33 = vector.load %arg8[%c0_21, %c0_22] : memref<1x256xf32, #tpu.memory_space<vmem>>, vector<1x256xf32>
    tpu.vector_store %arg8[%c0_21, %c0_22], %32 {strides = array<i32>} : memref<1x256xf32, #tpu.memory_space<vmem>>, vector<1x256xf32>,
    return
  }
  func.func @transform_0(%arg0: i32) -> (i32, i32) {
    %c0_i32 = arith.constant 0 : i32
    %c0_i32_0 = arith.constant 0 : i32
    return %arg0, %c0_i32 : i32, i32
  }
  func.func @transform_1(%arg0: i32) -> (i32, i32) {
    %c0_i32 = arith.constant 0 : i32
    %c0_i32_0 = arith.constant 0 : i32
    return %arg0, %c0_i32 : i32, i32
  }
  func.func @transform_2(%arg0: i32) -> (i32, i32) {
    %c0_i32 = arith.constant 0 : i32
    %c0_i32_0 = arith.constant 0 : i32
    return %arg0, %c0_i32 : i32, i32
  }
  func.func @transform_3(%arg0: i32) -> (i32, i32, i32) {
    %c0_i32 = arith.constant 0 : i32
    %c0_i32_0 = arith.constant 0 : i32
    %c0_i32_1 = arith.constant 0 : i32
    %c0_i32_2 = arith.constant 0 : i32
    return %c0_i32, %c0_i32_0, %c0_i32_1 : i32, i32, i32
  }
  func.func @transform_4(%arg0: i32) -> (i32, i32) {
    %c0_i32 = arith.constant 0 : i32
    %c0_i32_0 = arith.constant 0 : i32
    %c0_i32_1 = arith.constant 0 : i32
    return %c0_i32, %c0_i32_0 : i32, i32
  }
  func.func @transform_5(%arg0: i32) -> (i32, i32) {
    %c0_i32 = arith.constant 0 : i32
    %c0_i32_0 = arith.constant 0 : i32
    %c0_i32_1 = arith.constant 0 : i32
    return %c0_i32, %c0_i32_0 : i32, i32
  }
  func.func @transform_6(%arg0: i32) -> i32 {
    %c0_i32 = arith.constant 0 : i32
    %c0_i32_0 = arith.constant 0 : i32
    return %c0_i32 : i32
  }
  func.func @transform_7(%arg0: i32) -> (i32, i32) {
    %c0_i32 = arith.constant 0 : i32
    %c0_i32_0 = arith.constant 0 : i32
    return %c0_i32, %arg0 : i32, i32
  }
}

</mosaic_0001>

<llo_original>
// kernel: tpu_custom_call.1
$region0: #{tpu_custom_call.1}
  #allocation0 [shape = 'u32[]', space=smem, size = 0x4, offset = 0x4, fixed_abs, tag = 'smem constant byte address 0x4 - core index']
  #allocation1 [shape = 'u32[72,128]{1,0:T(1,128)}', space=vmem, size = 0x9000, scoped, tag = 'internal scratch']
  #allocation2 [shape = 'f32[1]{0:T(128)S(6)}', space=smem, size = 0x200, scoped, tag = 'scoped memory for tpu_custom_call.1']
  %s0 = inlined_call_operand.hbm [shape: f32[512,128], index: 0, kind: input, shape index: {}]
  %s1 = inlined_call_operand.hbm [shape: f32[512,128], index: 1, kind: input, shape index: {}]
  %s2 = inlined_call_operand.hbm [shape: f32[512,128], index: 2, kind: input, shape index: {}]
  %s3 = inlined_call_operand.hbm [shape: bf16[3,128,128], index: 3, kind: input, shape index: {}]
  %s4 = inlined_call_operand.vmem [shape: f32[1,128], index: 4, kind: input, shape index: {}]
  %s5 = inlined_call_operand.vmem [shape: f32[128,1], index: 5, kind: input, shape index: {}]
  %s6 = inlined_call_operand.<no memory space> [shape: f32[1], index: 6, kind: input, shape index: {}]
  %s7 = inlined_call_operand.hbm [shape: f32[1,512], index: 7, kind: output, shape index: {}]
  %s8 = sld [smem:[#allocation0]]
  $region77: #{tpu_custom_call.1} parent=0
    _
  %s10 = ssub.s32 1, %s8
  %s11 = scalar_select 0, %s10, %s8
  %12 = sst [smem:[#allocation2]] %s6
  $region1: #{tpu_custom_call.1} parent=0
    #allocation3 [shape = 'u8[262144]{0}', space=vmem, size = 0x40000, scoped, tag = 'input window, operand 0']
    #allocation4 [shape = 's32[2]{0}', space=sflag, size = 0x8, scoped, tag = 'scoped memory for tpu_custom_call.1']
    #allocation5 [shape = 's32[2]{0}', space=sflag, size = 0x8, scoped, tag = 'scoped memory for tpu_custom_call.1']
    #allocation6 [shape = 'u8[262144]{0}', space=vmem, size = 0x40000, scoped, tag = 'input window, operand 1']
    #allocation7 [shape = 's32[2]{0}', space=sflag, size = 0x8, scoped, tag = 'scoped memory for tpu_custom_call.1']
    #allocation8 [shape = 'u8[262144]{0}', space=vmem, size = 0x40000, scoped, tag = 'input window, operand 2']
    #allocation9 [shape = 'u8[98304]{0}', space=vmem, size = 0x18000, scoped, tag = 'input window, operand 3, single buffered']
    #allocation10 [shape = 's32[1]{0}', space=sflag, size = 0x4, scoped, tag = 'scoped memory for tpu_custom_call.1']
    #allocation11 [shape = 'u8[2048]{0}', space=vmem, size = 0x800, scoped, tag = 'output window, operand 0']
    %13 = vsyncpa [#allocation4], 0
    %s14 = scalar_lea.sflag [#allocation4], 1
    %15 = vsyncpa %s14, 0
    %16 = vsyncpa [#allocation7], 0
    %s17 = scalar_lea.sflag [#allocation7], 1
    %18 = vsyncpa %s17, 0
    %19 = vsyncpa [#allocation10], 0
    %20 = vsyncpa [#allocation5], 0
    %s21 = scalar_lea.sflag [#allocation5], 1
    %22 = vsyncpa %s21, 0
    loop: start=0, step=1, limit=4
    $region2: #{tpu_custom_call.1} parent=1 // loop_pre_header
      _
    $region3: #{tpu_custom_call.1} parent=1 // loop_header
      %s24 = sphi 0, %s28
      %p25 = scmp.ge.s32.totalorder %s24, 4
      %s34 = sphi 0, %s36
      %s37 = sphi 0, %s34
      %s38 = sphi 0, %s37
      %s54 = sphi 0, %s38
      %s60 = sphi 0, %s62
      %s63 = sphi 0, %s60
      %s64 = sphi 0, %s63
      %s80 = sphi 0, %s64
      %s86 = sphi 0, %s88
      %s89 = sphi 0, %s86
      %s90 = sphi 0, %s89
      %s106 = sphi 0, %s90
      %s110 = sphi 0, %s110
      %s112 = sphi 0, %s110
      %s113 = sphi 0, %s112
      %s127 = sphi 0, %s113
      %s131 = sphi 0, %s131
      %s133 = sphi 0, %s131
      %s134 = sphi 0, %s133
      %s148 = sphi 0, %s134
      %s152 = sphi 0, %s152
      %s154 = sphi 0, %s152
      %s155 = sphi 0, %s154
      %s169 = sphi 0, %s155
      %s173 = sphi 0, %s173
      %s175 = sphi 0, %s173
      %s176 = sphi 0, %s175
      %s190 = sphi 0, %s176
      %s196 = sphi 0, %s198
      %s199 = sphi 0, %s196
      %s200 = sphi 0, %s199
      %s216 = sphi 0, %s200
    $region4: #{tpu_custom_call.1} parent=1 // loop_header_branch
      %27 = sbr.rel (%p25) target = $region8
    $region5: #{tpu_custom_call.1} parent=1 // loop_body
      %s29 = ssub.s32 %s24, 1
      %s30 = ssub.s32 %s24, 2
      %s31 = sadd.s32 %s24, 1
      %s32 = ssub.s32 %s24, %s31
      %p33 = scmp.eq.s32.totalorder %s32, 0
      %s35 = sadd.s32 %s34, 1
      %s36 = scalar_select %p33, %s34, %s35
      %p39 = pneg %p33
      %p40 = scmp.eq.s32.totalorder %s24, 1
      %p41 = por %p39, %p40
      %p42 = scmp.ne.s32.totalorder %s34, %s37
      %p43 = scmp.eq.s32.totalorder %s24, 0
      %p44 = por %p42, %p43
      %p45 = scmp.ne.s32.totalorder %s34, %s37
      %p46 = scmp.eq.s32.totalorder %s29, 1
      %p47 = por %p45, %p46
      %p48 = scmp.ne.s32.totalorder %s37, %s38
      %p49 = scmp.eq.s32.totalorder %s29, 0
      %p50 = por %p48, %p49
      %p51 = scmp.ne.s32.totalorder %s37, %s38
      %p52 = scmp.eq.s32.totalorder %s30, 1
      %p53 = por %p51, %p52
      %p55 = scmp.ne.s32.totalorder %s38, %s54
      %p56 = scmp.eq.s32.totalorder %s30, 0
      %p57 = por %p55, %p56
      %s58 = ssub.s32 %s24, %s31
      %p59 = scmp.eq.s32.totalorder %s58, 0
      %s61 = sadd.s32 %s60, 1
      %s62 = scalar_select %p59, %s60, %s61
      %p65 = pneg %p59
      %p66 = scmp.eq.s32.totalorder %s24, 1
      %p67 = por %p65, %p66
      %p68 = scmp.ne.s32.totalorder %s60, %s63
      %p69 = scmp.eq.s32.totalorder %s24, 0
      %p70 = por %p68, %p69
      %p71 = scmp.ne.s32.totalorder %s60, %s63
      %p72 = scmp.eq.s32.totalorder %s29, 1
      %p73 = por %p71, %p72
      %p74 = scmp.ne.s32.totalorder %s63, %s64
      %p75 = scmp.eq.s32.totalorder %s29, 0
      %p76 = por %p74, %p75
      %p77 = scmp.ne.s32.totalorder %s63, %s64
      %p78 = scmp.eq.s32.totalorder %s30, 1
      %p79 = por %p77, %p78
      %p81 = scmp.ne.s32.totalorder %s64, %s80
      %p82 = scmp.eq.s32.totalorder %s30, 0
      %p83 = por %p81, %p82
      %s84 = ssub.s32 %s24, %s31
      %p85 = scmp.eq.s32.totalorder %s84, 0
      %s87 = sadd.s32 %s86, 1
      %s88 = scalar_select %p85, %s86, %s87
      %p91 = pneg %p85
      %p92 = scmp.eq.s32.totalorder %s24, 1
      %p93 = por %p91, %p92
      %p94 = scmp.ne.s32.totalorder %s86, %s89
      %p95 = scmp.eq.s32.totalorder %s24, 0
      %p96 = por %p94, %p95
      %p97 = scmp.ne.s32.totalorder %s86, %s89
      %p98 = scmp.eq.s32.totalorder %s29, 1
      %p99 = por %p97, %p98
      %p100 = scmp.ne.s32.totalorder %s89, %s90
      %p101 = scmp.eq.s32.totalorder %s29, 0
      %p102 = por %p100, %p101
      %p103 = scmp.ne.s32.totalorder %s89, %s90
      %p104 = scmp.eq.s32.totalorder %s30, 1
      %p105 = por %p103, %p104
      %p107 = scmp.ne.s32.totalorder %s90, %s106
      %p108 = scmp.eq.s32.totalorder %s30, 0
      %p109 = por %p107, %p108
      %s111 = sadd.s32 %s110, 1
      %p114 = scmp.eq.s32.totalorder %s24, 1
      %p115 = scmp.ne.s32.totalorder %s110, %s112
      %p116 = scmp.eq.s32.totalorder %s24, 0
      %p117 = por %p115, %p116
      %p118 = scmp.ne.s32.totalorder %s110, %s112
      %p119 = scmp.eq.s32.totalorder %s29, 1
      %p120 = por %p118, %p119
      %p121 = scmp.ne.s32.totalorder %s112, %s113
      %p122 = scmp.eq.s32.totalorder %s29, 0
      %p123 = por %p121, %p122
      %p124 = scmp.ne.s32.totalorder %s112, %s113
      %p125 = scmp.eq.s32.totalorder %s30, 1
      %p126 = por %p124, %p125
      %p128 = scmp.ne.s32.totalorder %s113, %s127
      %p129 = scmp.eq.s32.totalorder %s30, 0
      %p130 = por %p128, %p129
      %s132 = sadd.s32 %s131, 1
      %p135 = scmp.eq.s32.totalorder %s24, 1
      %p136 = scmp.ne.s32.totalorder %s131, %s133
      %p137 = scmp.eq.s32.totalorder %s24, 0
      %p138 = por %p136, %p137
      %p139 = scmp.ne.s32.totalorder %s131, %s133
      %p140 = scmp.eq.s32.totalorder %s29, 1
      %p141 = por %p139, %p140
      %p142 = scmp.ne.s32.totalorder %s133, %s134
      %p143 = scmp.eq.s32.totalorder %s29, 0
      %p144 = por %p142, %p143
      %p145 = scmp.ne.s32.totalorder %s133, %s134
      %p146 = scmp.eq.s32.totalorder %s30, 1
      %p147 = por %p145, %p146
      %p149 = scmp.ne.s32.totalorder %s134, %s148
      %p150 = scmp.eq.s32.totalorder %s30, 0
      %p151 = por %p149, %p150
      %s153 = sadd.s32 %s152, 1
      %p156 = scmp.eq.s32.totalorder %s24, 1
      %p157 = scmp.ne.s32.totalorder %s152, %s154
      %p158 = scmp.eq.s32.totalorder %s24, 0
      %p159 = por %p157, %p158
      %p160 = scmp.ne.s32.totalorder %s152, %s154
      %p161 = scmp.eq.s32.totalorder %s29, 1
      %p162 = por %p160, %p161
      %p163 = scmp.ne.s32.totalorder %s154, %s155
      %p164 = scmp.eq.s32.totalorder %s29, 0
      %p165 = por %p163, %p164
      %p166 = scmp.ne.s32.totalorder %s154, %s155
      %p167 = scmp.eq.s32.totalorder %s30, 1
      %p168 = por %p166, %p167
      %p170 = scmp.ne.s32.totalorder %s155, %s169
      %p171 = scmp.eq.s32.totalorder %s30, 0
      %p172 = por %p170, %p171
      %s174 = sadd.s32 %s173, 1
      %p177 = scmp.eq.s32.totalorder %s24, 1
      %p178 = scmp.ne.s32.totalorder %s173, %s175
      %p179 = scmp.eq.s32.totalorder %s24, 0
      %p180 = por %p178, %p179
      %p181 = scmp.ne.s32.totalorder %s173, %s175
      %p182 = scmp.eq.s32.totalorder %s29, 1
      %p183 = por %p181, %p182
      %p184 = scmp.ne.s32.totalorder %s175, %s176
      %p185 = scmp.eq.s32.totalorder %s29, 0
      %p186 = por %p184, %p185
      %p187 = scmp.ne.s32.totalorder %s175, %s176
      %p188 = scmp.eq.s32.totalorder %s30, 1
      %p189 = por %p187, %p188
      %p191 = scmp.ne.s32.totalorder %s176, %s190
      %p192 = scmp.eq.s32.totalorder %s30, 0
      %p193 = por %p191, %p192
      %s194 = ssub.s32 %s24, %s31
      %p195 = scmp.eq.s32.totalorder %s194, 0
      %s197 = sadd.s32 %s196, 1
      %s198 = scalar_select %p195, %s196, %s197
      %p201 = pneg %p195
      %p202 = scmp.eq.s32.totalorder %s24, 1
      %p203 = por %p201, %p202
      %p204 = scmp.ne.s32.totalorder %s196, %s199
      %p205 = scmp.eq.s32.totalorder %s24, 0
      %p206 = por %p204, %p205
      %p207 = scmp.ne.s32.totalorder %s196, %s199
      %p208 = scmp.eq.s32.totalorder %s29, 1
      %p209 = por %p207, %p208
      %p210 = scmp.ne.s32.totalorder %s199, %s200
      %p211 = scmp.eq.s32.totalorder %s29, 0
      %p212 = por %p210, %p211
      %p213 = scmp.ne.s32.totalorder %s199, %s200
      %p214 = scmp.eq.s32.totalorder %s30, 1
      %p215 = por %p213, %p214
      %p217 = scmp.ne.s32.totalorder %s200, %s216
      %p218 = scmp.eq.s32.totalorder %s30, 0
      %p219 = por %p217, %p218
      %p220 = scmp.le.s32.totalorder 1, %s24
      %p221 = scmp.lt.s32.totalorder %s24, 3
      %p222 = pnand %p220, %p221
      %p223 = pneg %p222
      // Predicated region
      $region9: #{tpu_custom_call.1} parent=5 // pred_check
        _
      $region10: #{tpu_custom_call.1} parent=5 // pred_check_branch
        %225 = sbr.rel (%p222) target = $region12
      $region11: #{tpu_custom_call.1} parent=5 // pred_region
        %s226 = ssub.s32 %s24, 1
        // Predicated region
        $region13: #{tpu_custom_call.1} parent=11 // pred_check
          %p227 = pneg %p123
        $region14: #{tpu_custom_call.1} parent=11 // pred_check_branch
          %229 = sbr.rel (%p227) target = $region16
        $region15: #{tpu_custom_call.1} parent=11 // pred_region
          %231 = vsyncadd [#allocation10], 0
          %s232 = sshll.u32 %s3, 4
          %s233 = int_to_ptr.hbm [resolvable:$true] %s232
          %s234 = sshll.u32 [#allocation9], 4
          %s235 = int_to_ptr.vmem [resolvable:$true] %s234
          %240 = dma.hbm_to_vmem [thread:$0]  %s233, 3072, %s235, [#allocation10], 64, 64, 4
        $region16: #{tpu_custom_call.1} parent=11 // pred_fallthru
          _
        // Predicated region
        $region17: #{tpu_custom_call.1} parent=11 // pred_check
          %p241 = pneg %p144
        $region18: #{tpu_custom_call.1} parent=11 // pred_check_branch
          %243 = sbr.rel (%p241) target = $region20
        $region19: #{tpu_custom_call.1} parent=11 // pred_region
          _
        $region20: #{tpu_custom_call.1} parent=11 // pred_fallthru
          _
        // Predicated region
        $region21: #{tpu_custom_call.1} parent=11 // pred_check
          %p244 = pneg %p165
        $region22: #{tpu_custom_call.1} parent=11 // pred_check_branch
          %246 = sbr.rel (%p244) target = $region24
        $region23: #{tpu_custom_call.1} parent=11 // pred_region
          _
        $region24: #{tpu_custom_call.1} parent=11 // pred_fallthru
          _
        // Predicated region
        $region25: #{tpu_custom_call.1} parent=11 // pred_check
          %p247 = pneg %p186
        $region26: #{tpu_custom_call.1} parent=11 // pred_check_branch
          %249 = sbr.rel (%p247) target = $region28
        $region27: #{tpu_custom_call.1} parent=11 // pred_region
          _
        $region28: #{tpu_custom_call.1} parent=11 // pred_fallthru
          _
      $region12: #{tpu_custom_call.1} parent=5 // pred_fallthru
        _
      %p250 = scmp.lt.s32.totalorder %s24, 2
      // Predicated region
      $region29: #{tpu_custom_call.1} parent=5 // pred_check
        %p251 = pneg %p250
      $region30: #{tpu_custom_call.1} parent=5 // pred_check_branch
        %253 = sbr.rel (%p251) target = $region32
      $region31: #{tpu_custom_call.1} parent=5 // pred_region
        // Predicated region
        $region33: #{tpu_custom_call.1} parent=31 // pred_check
          %p254 = pneg %p44
        $region34: #{tpu_custom_call.1} parent=31 // pred_check_branch
          %256 = sbr.rel (%p254) target = $region36
        $region35: #{tpu_custom_call.1} parent=31 // pred_region
          %s257 = sand.u32 %s34, 1
          %s258 = scalar_lea.sflag [#allocation4], %s257
          %s259 = sand.u32 %s34, 1
          %s260 = smul.addr %s259, 256
          %s261 = scalar_lea.vmem [#allocation3], %s260
          %s262 = smul.u32 32, %s24
          %264 = vsyncadd %s258, 0
          %s265 = smul.addr %s262, 8
          %s266 = scalar_lea.hbm %s0, %s265
          %s267 = sshll.u32 %s266, 4
          %s268 = int_to_ptr.hbm [resolvable:$true] %s267
          %s269 = sshll.u32 %s261, 4
          %s270 = int_to_ptr.vmem [resolvable:$true] %s269
          %275 = dma.hbm_to_vmem [thread:$0]  %s268, 4096, %s270, %s258, 128, 128, 8
        $region36: #{tpu_custom_call.1} parent=31 // pred_fallthru
          _
        // Predicated region
        $region37: #{tpu_custom_call.1} parent=31 // pred_check
          %p276 = pneg %p70
        $region38: #{tpu_custom_call.1} parent=31 // pred_check_branch
          %278 = sbr.rel (%p276) target = $region40
        $region39: #{tpu_custom_call.1} parent=31 // pred_region
          %s279 = sand.u32 %s24, 1
          %s280 = scalar_lea.sflag [#allocation7], %s279
          %s281 = sand.u32 %s60, 1
          %s282 = smul.addr %s281, 256
          %s283 = scalar_lea.vmem [#allocation6], %s282
          %s284 = smul.u32 32, %s24
          %286 = vsyncadd %s280, 0
          %s287 = smul.addr %s284, 8
          %s288 = scalar_lea.hbm %s1, %s287
          %s289 = sshll.u32 %s288, 4
          %s290 = int_to_ptr.hbm [resolvable:$true] %s289
          %s291 = sshll.u32 %s283, 4
          %s292 = int_to_ptr.vmem [resolvable:$true] %s291
          %297 = dma.hbm_to_vmem [thread:$0]  %s290, 4096, %s292, %s280, 128, 128, 8
        $region40: #{tpu_custom_call.1} parent=31 // pred_fallthru
          _
        // Predicated region
        $region41: #{tpu_custom_call.1} parent=31 // pred_check
          %p298 = pneg %p96
        $region42: #{tpu_custom_call.1} parent=31 // pred_check_branch
          %300 = sbr.rel (%p298) target = $region44
        $region43: #{tpu_custom_call.1} parent=31 // pred_region
          %s301 = sand.u32 %s24, 1
          %s302 = scalar_lea.sflag [#allocation7], %s301
          %s303 = sand.u32 %s86, 1
          %s304 = smul.addr %s303, 256
          %s305 = scalar_lea.vmem [#allocation8], %s304
          %s306 = smul.u32 32, %s24
          %308 = vsyncadd %s302, 0
          %s309 = smul.addr %s306, 8
          %s310 = scalar_lea.hbm %s2, %s309
          %s311 = sshll.u32 %s310, 4
          %s312 = int_to_ptr.hbm [resolvable:$true] %s311
          %s313 = sshll.u32 %s305, 4
          %s314 = int_to_ptr.vmem [resolvable:$true] %s313
          %319 = dma.hbm_to_vmem [thread:$0]  %s312, 4096, %s314, %s302, 128, 128, 8
        $region44: #{tpu_custom_call.1} parent=31 // pred_fallthru
          _
      $region32: #{tpu_custom_call.1} parent=5 // pred_fallthru
        _
      %p320 = scmp.le.s32.totalorder 1, %s24
      %p321 = scmp.lt.s32.totalorder %s24, 3
      %p322 = pnand %p320, %p321
      %p323 = pneg %p322
      // Predicated region
      $region45: #{tpu_custom_call.1} parent=5 // pred_check
        _
      $region46: #{tpu_custom_call.1} parent=5 // pred_check_branch
        %325 = sbr.rel (%p322) target = $region48
      $region47: #{tpu_custom_call.1} parent=5 // pred_region
        %s326 = ssub.s32 %s24, 1
        %s327 = sand.u32 %s37, 1
        %s328 = scalar_lea.sflag [#allocation4], %s327
        %s329 = sand.u32 %s37, 1
        %s330 = smul.addr %s329, 256
        %s331 = scalar_lea.vmem [#allocation3], %s330
        // Predicated region
        $region49: #{tpu_custom_call.1} parent=47 // pred_check
          %p332 = pneg %p50
        $region50: #{tpu_custom_call.1} parent=47 // pred_check_branch
          %334 = sbr.rel (%p332) target = $region52
        $region51: #{tpu_custom_call.1} parent=47 // pred_region
          %336 = dma.done %s328, 4096
        $region52: #{tpu_custom_call.1} parent=47 // pred_fallthru
          _
        %s337 = sand.u32 %s29, 1
        %s338 = scalar_lea.sflag [#allocation7], %s337
        %s339 = sand.u32 %s63, 1
        %s340 = smul.addr %s339, 256
        %s341 = scalar_lea.vmem [#allocation6], %s340
        // Predicated region
        $region53: #{tpu_custom_call.1} parent=47 // pred_check
          %p342 = pneg %p76
        $region54: #{tpu_custom_call.1} parent=47 // pred_check_branch
          %344 = sbr.rel (%p342) target = $region56
        $region55: #{tpu_custom_call.1} parent=47 // pred_region
          %346 = dma.done %s338, 4096
        $region56: #{tpu_custom_call.1} parent=47 // pred_fallthru
          _
        %s347 = sand.u32 %s29, 1
        %s348 = scalar_lea.sflag [#allocation7], %s347
        %s349 = sand.u32 %s89, 1
        %s350 = smul.addr %s349, 256
        %s351 = scalar_lea.vmem [#allocation8], %s350
        // Predicated region
        $region57: #{tpu_custom_call.1} parent=47 // pred_check
          %p352 = pneg %p102
        $region58: #{tpu_custom_call.1} parent=47 // pred_check_branch
          %354 = sbr.rel (%p352) target = $region60
        $region59: #{tpu_custom_call.1} parent=47 // pred_region
          %356 = dma.done %s348, 4096
        $region60: #{tpu_custom_call.1} parent=47 // pred_fallthru
          _
        // Predicated region
        $region61: #{tpu_custom_call.1} parent=47 // pred_check
          %p357 = pneg %p123
        $region62: #{tpu_custom_call.1} parent=47 // pred_check_branch
          %359 = sbr.rel (%p357) target = $region64
        $region63: #{tpu_custom_call.1} parent=47 // pred_region
          %361 = dma.done [#allocation10], 3072
        $region64: #{tpu_custom_call.1} parent=47 // pred_fallthru
          _
        %s362 = sand.u32 %s37, 1
        %s363 = scalar_lea.sflag [#allocation4], %s362
        %s364 = sand.u32 %s37, 1
        %s365 = smul.addr %s364, 256
        %s366 = scalar_lea.vmem [#allocation3], %s365
        %p367 = pneg %p50
        %p368 = pneg %p47
        %s369 = sand.u32 %s29, 1
        %s370 = scalar_lea.sflag [#allocation7], %s369
        %s371 = sand.u32 %s63, 1
        %s372 = smul.addr %s371, 256
        %s373 = scalar_lea.vmem [#allocation6], %s372
        %p374 = pneg %p76
        %p375 = pneg %p73
        %s376 = sand.u32 %s29, 1
        %s377 = scalar_lea.sflag [#allocation7], %s376
        %s378 = sand.u32 %s89, 1
        %s379 = smul.addr %s378, 256
        %s380 = scalar_lea.vmem [#allocation8], %s379
        %p381 = pneg %p102
        %p382 = pneg %p99
        %p383 = pneg %p123
        %p384 = pneg %p120
        %p385 = pneg %p144
        %p386 = pneg %p141
        %p387 = pneg %p165
        %p388 = pneg %p162
        %p389 = pneg %p186
        %p390 = pneg %p183
        %p391 = pneg %p212
        %p392 = pneg %p209
        %s393 = sand.u32 %s199, 1
        %s394 = scalar_lea.sflag [#allocation5], %s393
        %s395 = sand.u32 %s199, 1
        %s396 = smul.addr %s395, 2
        %s397 = scalar_lea.vmem [#allocation11], %s396
        %s398 = smul.u32 32, %s29
        %s399 = smul.u32 32, %s29
        %s400 = smul.u32 32, %s29
        %s401 = smul.u32 2, %s29
        %v402 = vld [vmem:[%s331] sm:$0xff]
        %v403 = vld [vmem:[%s331 + $0x8] sm:$0xff]
        %v404 = vld [vmem:[%s331 + $0x10] sm:$0xff]
        %v405 = vld [vmem:[%s331 + $0x18] sm:$0xff]
        %v406 = vld [vmem:[%s331 + $0x20] sm:$0xff]
        %v407 = vld [vmem:[%s331 + $0x28] sm:$0xff]
        %v408 = vld [vmem:[%s331 + $0x30] sm:$0xff]
        %v409 = vld [vmem:[%s331 + $0x38] sm:$0xff]
        %v410 = vld [vmem:[%s331 + $0x40] sm:$0xff]
        %v411 = vld [vmem:[%s331 + $0x48] sm:$0xff]
        %v412 = vld [vmem:[%s331 + $0x50] sm:$0xff]
        %v413 = vld [vmem:[%s331 + $0x58] sm:$0xff]
        %v414 = vld [vmem:[%s331 + $0x60] sm:$0xff]
        %v415 = vld [vmem:[%s331 + $0x68] sm:$0xff]
        %v416 = vld [vmem:[%s331 + $0x70] sm:$0xff]
        %v417 = vld [vmem:[%s331 + $0x78] sm:$0xff]
        %v418 = vld [vmem:[%s331 + $0x80] sm:$0xff]
        %v419 = vld [vmem:[%s331 + $0x88] sm:$0xff]
        %v420 = vld [vmem:[%s331 + $0x90] sm:$0xff]
        %v421 = vld [vmem:[%s331 + $0x98] sm:$0xff]
        %v422 = vld [vmem:[%s331 + $0xa0] sm:$0xff]
        %v423 = vld [vmem:[%s331 + $0xa8] sm:$0xff]
        %v424 = vld [vmem:[%s331 + $0xb0] sm:$0xff]
        %v425 = vld [vmem:[%s331 + $0xb8] sm:$0xff]
        %v426 = vld [vmem:[%s331 + $0xc0] sm:$0xff]
        %v427 = vld [vmem:[%s331 + $0xc8] sm:$0xff]
        %v428 = vld [vmem:[%s331 + $0xd0] sm:$0xff]
        %v429 = vld [vmem:[%s331 + $0xd8] sm:$0xff]
        %v430 = vld [vmem:[%s331 + $0xe0] sm:$0xff]
        %v431 = vld [vmem:[%s331 + $0xe8] sm:$0xff]
        %v432 = vld [vmem:[%s331 + $0xf0] sm:$0xff]
        %v433 = vld [vmem:[%s331 + $0xf8] sm:$0xff]
        %v434 = vpack.c.bf16 %v403, %v402
        %v435 = vpack.c.bf16 %v405, %v404
        %v436 = vpack.c.bf16 %v407, %v406
        %v437 = vpack.c.bf16 %v409, %v408
        %v438 = vpack.c.bf16 %v411, %v410
        %v439 = vpack.c.bf16 %v413, %v412
        %v440 = vpack.c.bf16 %v415, %v414
        %v441 = vpack.c.bf16 %v417, %v416
        %v442 = vpack.c.bf16 %v419, %v418
        %v443 = vpack.c.bf16 %v421, %v420
        %v444 = vpack.c.bf16 %v423, %v422
        %v445 = vpack.c.bf16 %v425, %v424
        %v446 = vpack.c.bf16 %v427, %v426
        %v447 = vpack.c.bf16 %v429, %v428
        %v448 = vpack.c.bf16 %v431, %v430
        %v449 = vpack.c.bf16 %v433, %v432
        %v450 = vld [vmem:[#allocation9] sm:$0xf]
        %v451 = vld [vmem:[#allocation9 + $0x4] sm:$0xf]
        %v452 = vld [vmem:[#allocation9 + $0x8] sm:$0xf]
        %v453 = vld [vmem:[#allocation9 + $0xc] sm:$0xf]
        %v454 = vld [vmem:[#allocation9 + $0x10] sm:$0xf]
        %v455 = vld [vmem:[#allocation9 + $0x14] sm:$0xf]
        %v456 = vld [vmem:[#allocation9 + $0x18] sm:$0xf]
        %v457 = vld [vmem:[#allocation9 + $0x1c] sm:$0xf]
        %v458 = vld [vmem:[#allocation9 + $0x20] sm:$0xf]
        %v459 = vld [vmem:[#allocation9 + $0x24] sm:$0xf]
        %v460 = vld [vmem:[#allocation9 + $0x28] sm:$0xf]
        %v461 = vld [vmem:[#allocation9 + $0x2c] sm:$0xf]
        %v462 = vld [vmem:[#allocation9 + $0x30] sm:$0xf]
        %v463 = vld [vmem:[#allocation9 + $0x34] sm:$0xf]
        %v464 = vld [vmem:[#allocation9 + $0x38] sm:$0xf]
        %v465 = vld [vmem:[#allocation9 + $0x3c] sm:$0xf]
        %v466 = vld [vmem:[%s341] sm:$0xff]
        %v467 = vld [vmem:[%s341 + $0x8] sm:$0xff]
        %v468 = vld [vmem:[%s341 + $0x10] sm:$0xff]
        %v469 = vld [vmem:[%s341 + $0x18] sm:$0xff]
        %v470 = vld [vmem:[%s341 + $0x20] sm:$0xff]
        %v471 = vld [vmem:[%s341 + $0x28] sm:$0xff]
        %v472 = vld [vmem:[%s341 + $0x30] sm:$0xff]
        %v473 = vld [vmem:[%s341 + $0x38] sm:$0xff]
        %v474 = vld [vmem:[%s341 + $0x40] sm:$0xff]
        %v475 = vld [vmem:[%s341 + $0x48] sm:$0xff]
        %v476 = vld [vmem:[%s341 + $0x50] sm:$0xff]
        %v477 = vld [vmem:[%s341 + $0x58] sm:$0xff]
        %v478 = vld [vmem:[%s341 + $0x60] sm:$0xff]
        %v479 = vld [vmem:[%s341 + $0x68] sm:$0xff]
        %v480 = vld [vmem:[%s341 + $0x70] sm:$0xff]
        %v481 = vld [vmem:[%s341 + $0x78] sm:$0xff]
        %v482 = vld [vmem:[%s341 + $0x80] sm:$0xff]
        %v483 = vld [vmem:[%s341 + $0x88] sm:$0xff]
        %v484 = vld [vmem:[%s341 + $0x90] sm:$0xff]
        %v485 = vld [vmem:[%s341 + $0x98] sm:$0xff]
        %v486 = vld [vmem:[%s341 + $0xa0] sm:$0xff]
        %v487 = vld [vmem:[%s341 + $0xa8] sm:$0xff]
        %v488 = vld [vmem:[%s341 + $0xb0] sm:$0xff]
        %v489 = vld [vmem:[%s341 + $0xb8] sm:$0xff]
        %v490 = vld [vmem:[%s341 + $0xc0] sm:$0xff]
        %v491 = vld [vmem:[%s341 + $0xc8] sm:$0xff]
        %v492 = vld [vmem:[%s341 + $0xd0] sm:$0xff]
        %v493 = vld [vmem:[%s341 + $0xd8] sm:$0xff]
        %v494 = vld [vmem:[%s341 + $0xe0] sm:$0xff]
        %v495 = vld [vmem:[%s341 + $0xe8] sm:$0xff]
        %v496 = vld [vmem:[%s341 + $0xf0] sm:$0xff]
        %v497 = vld [vmem:[%s341 + $0xf8] sm:$0xff]
        %v498 = vpack.c.bf16 %v467, %v466
        %v499 = vpack.c.bf16 %v469, %v468
        %v500 = vpack.c.bf16 %v471, %v470
        %v501 = vpack.c.bf16 %v473, %v472
        %v502 = vpack.c.bf16 %v475, %v474
        %v503 = vpack.c.bf16 %v477, %v476
        %v504 = vpack.c.bf16 %v479, %v478
        %v505 = vpack.c.bf16 %v481, %v480
        %v506 = vpack.c.bf16 %v483, %v482
        %v507 = vpack.c.bf16 %v485, %v484
        %v508 = vpack.c.bf16 %v487, %v486
        %v509 = vpack.c.bf16 %v489, %v488
        %v510 = vpack.c.bf16 %v491, %v490
        %v511 = vpack.c.bf16 %v493, %v492
        %v512 = vpack.c.bf16 %v495, %v494
        %v513 = vpack.c.bf16 %v497, %v496
        %s514 = scalar_lea.vmem [#allocation9], 64
        %v515 = vld [vmem:[%s514] sm:$0xf]
        %v516 = vld [vmem:[%s514 + $0x4] sm:$0xf]
        %v517 = vld [vmem:[%s514 + $0x8] sm:$0xf]
        %v518 = vld [vmem:[%s514 + $0xc] sm:$0xf]
        %v519 = vld [vmem:[%s514 + $0x10] sm:$0xf]
        %v520 = vld [vmem:[%s514 + $0x14] sm:$0xf]
        %v521 = vld [vmem:[%s514 + $0x18] sm:$0xf]
        %v522 = vld [vmem:[%s514 + $0x1c] sm:$0xf]
        %v523 = vld [vmem:[%s514 + $0x20] sm:$0xf]
        %v524 = vld [vmem:[%s514 + $0x24] sm:$0xf]
        %v525 = vld [vmem:[%s514 + $0x28] sm:$0xf]
        %v526 = vld [vmem:[%s514 + $0x2c] sm:$0xf]
        %v527 = vld [vmem:[%s514 + $0x30] sm:$0xf]
        %v528 = vld [vmem:[%s514 + $0x34] sm:$0xf]
        %v529 = vld [vmem:[%s514 + $0x38] sm:$0xf]
        %v530 = vld [vmem:[%s514 + $0x3c] sm:$0xf]
        %v547 = vunpack.c.l.b16 %v515
        %v548 = vunpack.c.l.b16 %v516
        %v549 = vunpack.c.l.b16 %v517
        %v550 = vunpack.c.l.b16 %v518
        %v551 = vunpack.c.l.b16 %v519
        %v552 = vunpack.c.l.b16 %v520
        %v553 = vunpack.c.l.b16 %v521
        %v554 = vunpack.c.l.b16 %v522
        %v555 = vunpack.c.l.b16 %v523
        %v556 = vunpack.c.l.b16 %v524
        %v557 = vunpack.c.l.b16 %v525
        %v558 = vunpack.c.l.b16 %v526
        %v559 = vunpack.c.l.b16 %v527
        %v560 = vunpack.c.l.b16 %v528
        %v561 = vunpack.c.l.b16 %v529
        %v562 = vunpack.c.l.b16 %v530
        %v563 = vpack.c.b16 %v548, %v547
        %v564 = vpack.c.b16 %v550, %v549
        %v565 = vpack.c.b16 %v552, %v551
        %v566 = vpack.c.b16 %v554, %v553
        %v567 = vpack.c.b16 %v556, %v555
        %v568 = vpack.c.b16 %v558, %v557
        %v569 = vpack.c.b16 %v560, %v559
        %v570 = vpack.c.b16 %v562, %v561
        %579 = vmatpush.bf16.msra.mxu0 %v570
        %580 = vmatpush.bf16.msra.mxu0 %v569
        %581 = vmatpush.bf16.msra.mxu0 %v568
        %582 = vmatpush.bf16.msra.mxu0 %v567
        %583 = vmatpush.bf16.msra.mxu0 %v566
        %584 = vmatpush.bf16.msra.mxu0 %v565
        %585 = vmatpush.bf16.msra.mxu0 %v564
        %586 = vmatpush.bf16.msra.mxu0 %v563
        %587 = vmatmul.bf16.gmra.mxu0 %v498
        %v588 = vpop.f32.mrf.mxu0
        %v589 = vadd.f32 0.0, %v588
        %v590 = vpop.f32.mrf.mxu0
        %v591 = vadd.f32 0.0, %v590
        %592 = vmatmul.bf16.gmra.mxu0 %v499
        %v593 = vpop.f32.mrf.mxu0
        %v594 = vadd.f32 0.0, %v593
        %v595 = vpop.f32.mrf.mxu0
        %v596 = vadd.f32 0.0, %v595
        %597 = vmatmul.bf16.gmra.mxu0 %v500
        %v598 = vpop.f32.mrf.mxu0
        %v599 = vadd.f32 0.0, %v598
        %v600 = vpop.f32.mrf.mxu0
        %v601 = vadd.f32 0.0, %v600
        %602 = vmatmul.bf16.gmra.mxu0 %v501
        %v603 = vpop.f32.mrf.mxu0
        %v604 = vadd.f32 0.0, %v603
        %v605 = vpop.f32.mrf.mxu0
        %v606 = vadd.f32 0.0, %v605
        %607 = vmatmul.bf16.gmra.mxu0 %v502
        %v608 = vpop.f32.mrf.mxu0
        %v609 = vadd.f32 0.0, %v608
        %v610 = vpop.f32.mrf.mxu0
        %v611 = vadd.f32 0.0, %v610
        %612 = vmatmul.bf16.gmra.mxu0 %v503
        %v613 = vpop.f32.mrf.mxu0
        %v614 = vadd.f32 0.0, %v613
        %v615 = vpop.f32.mrf.mxu0
        %v616 = vadd.f32 0.0, %v615
        %617 = vmatmul.bf16.gmra.mxu0 %v504
        %v618 = vpop.f32.mrf.mxu0
        %v619 = vadd.f32 0.0, %v618
        %v620 = vpop.f32.mrf.mxu0
        %v621 = vadd.f32 0.0, %v620
        %622 = vmatmul.bf16.gmra.mxu0 %v505
        %v623 = vpop.f32.mrf.mxu0
        %v624 = vadd.f32 0.0, %v623
        %v625 = vpop.f32.mrf.mxu0
        %v626 = vadd.f32 0.0, %v625
        %627 = vmatmul.bf16.gmra.mxu0 %v506
        %v628 = vpop.f32.mrf.mxu0
        %v629 = vadd.f32 0.0, %v628
        %v630 = vpop.f32.mrf.mxu0
        %v631 = vadd.f32 0.0, %v630
        %632 = vmatmul.bf16.gmra.mxu0 %v507
        %v633 = vpop.f32.mrf.mxu0
        %v634 = vadd.f32 0.0, %v633
        %v635 = vpop.f32.mrf.mxu0
        %v636 = vadd.f32 0.0, %v635
        %637 = vmatmul.bf16.gmra.mxu0 %v508
        %v638 = vpop.f32.mrf.mxu0
        %v639 = vadd.f32 0.0, %v638
        %v640 = vpop.f32.mrf.mxu0
        %v641 = vadd.f32 0.0, %v640
        %642 = vmatmul.bf16.gmra.mxu0 %v509
        %v643 = vpop.f32.mrf.mxu0
        %v644 = vadd.f32 0.0, %v643
        %v645 = vpop.f32.mrf.mxu0
        %v646 = vadd.f32 0.0, %v645
        %647 = vmatmul.bf16.gmra.mxu0 %v510
        %v648 = vpop.f32.mrf.mxu0
        %v649 = vadd.f32 0.0, %v648
        %v650 = vpop.f32.mrf.mxu0
        %v651 = vadd.f32 0.0, %v650
        %652 = vmatmul.bf16.gmra.mxu0 %v511
        %v653 = vpop.f32.mrf.mxu0
        %v654 = vadd.f32 0.0, %v653
        %v655 = vpop.f32.mrf.mxu0
        %v656 = vadd.f32 0.0, %v655
        %657 = vmatmul.bf16.gmra.mxu0 %v512
        %v658 = vpop.f32.mrf.mxu0
        %v659 = vadd.f32 0.0, %v658
        %v660 = vpop.f32.mrf.mxu0
        %v661 = vadd.f32 0.0, %v660
        %662 = vmatmul.bf16.gmra.mxu0 %v513
        %v663 = vpop.f32.mrf.mxu0
        %v664 = vadd.f32 0.0, %v663
        %v665 = vpop.f32.mrf.mxu0
        %v666 = vadd.f32 0.0, %v665
        %667 = vdwg.mxu0
        %v684 = vunpack.c.l.b16 %v450
        %v685 = vunpack.c.l.b16 %v451
        %v686 = vunpack.c.l.b16 %v452
        %v687 = vunpack.c.l.b16 %v453
        %v688 = vunpack.c.l.b16 %v454
        %v689 = vunpack.c.l.b16 %v455
        %v690 = vunpack.c.l.b16 %v456
        %v691 = vunpack.c.l.b16 %v457
        %v692 = vunpack.c.l.b16 %v458
        %v693 = vunpack.c.l.b16 %v459
        %v694 = vunpack.c.l.b16 %v460
        %v695 = vunpack.c.l.b16 %v461
        %v696 = vunpack.c.l.b16 %v462
        %v697 = vunpack.c.l.b16 %v463
        %v698 = vunpack.c.l.b16 %v464
        %v699 = vunpack.c.l.b16 %v465
        %v700 = vpack.c.b16 %v685, %v684
        %v701 = vpack.c.b16 %v687, %v686
        %v702 = vpack.c.b16 %v689, %v688
        %v703 = vpack.c.b16 %v691, %v690
        %v704 = vpack.c.b16 %v693, %v692
        %v705 = vpack.c.b16 %v695, %v694
        %v706 = vpack.c.b16 %v697, %v696
        %v707 = vpack.c.b16 %v699, %v698
        %716 = vmatpush.bf16.msra.mxu0 %v707
        %717 = vmatpush.bf16.msra.mxu0 %v706
        %718 = vmatpush.bf16.msra.mxu0 %v705
        %719 = vmatpush.bf16.msra.mxu0 %v704
        %720 = vmatpush.bf16.msra.mxu0 %v703
        %721 = vmatpush.bf16.msra.mxu0 %v702
        %722 = vmatpush.bf16.msra.mxu0 %v701
        %723 = vmatpush.bf16.msra.mxu0 %v700
        %724 = vmatmul.bf16.gmra.mxu0 %v434
        %v725 = vpop.f32.mrf.mxu0
        %v726 = vadd.f32 %v589, %v725
        %v727 = vpop.f32.mrf.mxu0
        %v728 = vadd.f32 %v591, %v727
        %729 = vmatmul.bf16.gmra.mxu0 %v435
        %v730 = vpop.f32.mrf.mxu0
        %v731 = vadd.f32 %v594, %v730
        %v732 = vpop.f32.mrf.mxu0
        %v733 = vadd.f32 %v596, %v732
        %734 = vmatmul.bf16.gmra.mxu0 %v436
        %v735 = vpop.f32.mrf.mxu0
        %v736 = vadd.f32 %v599, %v735
        %v737 = vpop.f32.mrf.mxu0
        %v738 = vadd.f32 %v601, %v737
        %739 = vmatmul.bf16.gmra.mxu0 %v437
        %v740 = vpop.f32.mrf.mxu0
        %v741 = vadd.f32 %v604, %v740
        %v742 = vpop.f32.mrf.mxu0
        %v743 = vadd.f32 %v606, %v742
        %744 = vmatmul.bf16.gmra.mxu0 %v438
        %v745 = vpop.f32.mrf.mxu0
        %v746 = vadd.f32 %v609, %v745
        %v747 = vpop.f32.mrf.mxu0
        %v748 = vadd.f32 %v611, %v747
        %749 = vmatmul.bf16.gmra.mxu0 %v439
        %v750 = vpop.f32.mrf.mxu0
        %v751 = vadd.f32 %v614, %v750
        %v752 = vpop.f32.mrf.mxu0
        %v753 = vadd.f32 %v616, %v752
        %754 = vmatmul.bf16.gmra.mxu0 %v440
        %v755 = vpop.f32.mrf.mxu0
        %v756 = vadd.f32 %v619, %v755
        %v757 = vpop.f32.mrf.mxu0
        %v758 = vadd.f32 %v621, %v757
        %759 = vmatmul.bf16.gmra.mxu0 %v441
        %v760 = vpop.f32.mrf.mxu0
        %v761 = vadd.f32 %v624, %v760
        %v762 = vpop.f32.mrf.mxu0
        %v763 = vadd.f32 %v626, %v762
        %764 = vmatmul.bf16.gmra.mxu0 %v442
        %v765 = vpop.f32.mrf.mxu0
        %v766 = vadd.f32 %v629, %v765
        %v767 = vpop.f32.mrf.mxu0
        %v768 = vadd.f32 %v631, %v767
        %769 = vmatmul.bf16.gmra.mxu0 %v443
        %v770 = vpop.f32.mrf.mxu0
        %v771 = vadd.f32 %v634, %v770
        %v772 = vpop.f32.mrf.mxu0
        %v773 = vadd.f32 %v636, %v772
        %774 = vmatmul.bf16.gmra.mxu0 %v444
        %v775 = vpop.f32.mrf.mxu0
        %v776 = vadd.f32 %v639, %v775
        %v777 = vpop.f32.mrf.mxu0
        %v778 = vadd.f32 %v641, %v777
        %779 = vmatmul.bf16.gmra.mxu0 %v445
        %v780 = vpop.f32.mrf.mxu0
        %v781 = vadd.f32 %v644, %v780
        %v782 = vpop.f32.mrf.mxu0
        %v783 = vadd.f32 %v646, %v782
        %784 = vmatmul.bf16.gmra.mxu0 %v446
        %v785 = vpop.f32.mrf.mxu0
        %v786 = vadd.f32 %v649, %v785
        %v787 = vpop.f32.mrf.mxu0
        %v788 = vadd.f32 %v651, %v787
        %789 = vmatmul.bf16.gmra.mxu0 %v447
        %v790 = vpop.f32.mrf.mxu0
        %v791 = vadd.f32 %v654, %v790
        %v792 = vpop.f32.mrf.mxu0
        %v793 = vadd.f32 %v656, %v792
        %794 = vmatmul.bf16.gmra.mxu0 %v448
        %v795 = vpop.f32.mrf.mxu0
        %v796 = vadd.f32 %v659, %v795
        %v797 = vpop.f32.mrf.mxu0
        %v798 = vadd.f32 %v661, %v797
        %799 = vmatmul.bf16.gmra.mxu0 %v449
        %v800 = vpop.f32.mrf.mxu0
        %v801 = vadd.f32 %v664, %v800
        %v802 = vpop.f32.mrf.mxu0
        %v803 = vadd.f32 %v666, %v802
        %804 = vdwg.mxu0
        %v805 = vld [vmem:[%s351] sm:$0xff]
        %v806 = vld [vmem:[%s351 + $0x8] sm:$0xff]
        %v807 = vld [vmem:[%s351 + $0x10] sm:$0xff]
        %v808 = vld [vmem:[%s351 + $0x18] sm:$0xff]
        %v809 = vld [vmem:[%s351 + $0x20] sm:$0xff]
        %v810 = vld [vmem:[%s351 + $0x28] sm:$0xff]
        %v811 = vld [vmem:[%s351 + $0x30] sm:$0xff]
        %v812 = vld [vmem:[%s351 + $0x38] sm:$0xff]
        %v813 = vld [vmem:[%s351 + $0x40] sm:$0xff]
        %v814 = vld [vmem:[%s351 + $0x48] sm:$0xff]
        %v815 = vld [vmem:[%s351 + $0x50] sm:$0xff]
        %v816 = vld [vmem:[%s351 + $0x58] sm:$0xff]
        %v817 = vld [vmem:[%s351 + $0x60] sm:$0xff]
        %v818 = vld [vmem:[%s351 + $0x68] sm:$0xff]
        %v819 = vld [vmem:[%s351 + $0x70] sm:$0xff]
        %v820 = vld [vmem:[%s351 + $0x78] sm:$0xff]
        %v821 = vld [vmem:[%s351 + $0x80] sm:$0xff]
        %v822 = vld [vmem:[%s351 + $0x88] sm:$0xff]
        %v823 = vld [vmem:[%s351 + $0x90] sm:$0xff]
        %v824 = vld [vmem:[%s351 + $0x98] sm:$0xff]
        %v825 = vld [vmem:[%s351 + $0xa0] sm:$0xff]
        %v826 = vld [vmem:[%s351 + $0xa8] sm:$0xff]
        %v827 = vld [vmem:[%s351 + $0xb0] sm:$0xff]
        %v828 = vld [vmem:[%s351 + $0xb8] sm:$0xff]
        %v829 = vld [vmem:[%s351 + $0xc0] sm:$0xff]
        %v830 = vld [vmem:[%s351 + $0xc8] sm:$0xff]
        %v831 = vld [vmem:[%s351 + $0xd0] sm:$0xff]
        %v832 = vld [vmem:[%s351 + $0xd8] sm:$0xff]
        %v833 = vld [vmem:[%s351 + $0xe0] sm:$0xff]
        %v834 = vld [vmem:[%s351 + $0xe8] sm:$0xff]
        %v835 = vld [vmem:[%s351 + $0xf0] sm:$0xff]
        %v836 = vld [vmem:[%s351 + $0xf8] sm:$0xff]
        %v837 = vpack.c.bf16 %v806, %v805
        %v838 = vpack.c.bf16 %v808, %v807
        %v839 = vpack.c.bf16 %v810, %v809
        %v840 = vpack.c.bf16 %v812, %v811
        %v841 = vpack.c.bf16 %v814, %v813
        %v842 = vpack.c.bf16 %v816, %v815
        %v843 = vpack.c.bf16 %v818, %v817
        %v844 = vpack.c.bf16 %v820, %v819
        %v845 = vpack.c.bf16 %v822, %v821
        %v846 = vpack.c.bf16 %v824, %v823
        %v847 = vpack.c.bf16 %v826, %v825
        %v848 = vpack.c.bf16 %v828, %v827
        %v849 = vpack.c.bf16 %v830, %v829
        %v850 = vpack.c.bf16 %v832, %v831
        %v851 = vpack.c.bf16 %v834, %v833
        %v852 = vpack.c.bf16 %v836, %v835
        %s853 = scalar_lea.vmem [#allocation9], 128
        %v854 = vld [vmem:[%s853] sm:$0xf]
        %v855 = vld [vmem:[%s853 + $0x4] sm:$0xf]
        %v856 = vld [vmem:[%s853 + $0x8] sm:$0xf]
        %v857 = vld [vmem:[%s853 + $0xc] sm:$0xf]
        %v858 = vld [vmem:[%s853 + $0x10] sm:$0xf]
        %v859 = vld [vmem:[%s853 + $0x14] sm:$0xf]
        %v860 = vld [vmem:[%s853 + $0x18] sm:$0xf]
        %v861 = vld [vmem:[%s853 + $0x1c] sm:$0xf]
        %v862 = vld [vmem:[%s853 + $0x20] sm:$0xf]
        %v863 = vld [vmem:[%s853 + $0x24] sm:$0xf]
        %v864 = vld [vmem:[%s853 + $0x28] sm:$0xf]
        %v865 = vld [vmem:[%s853 + $0x2c] sm:$0xf]
        %v866 = vld [vmem:[%s853 + $0x30] sm:$0xf]
        %v867 = vld [vmem:[%s853 + $0x34] sm:$0xf]
        %v868 = vld [vmem:[%s853 + $0x38] sm:$0xf]
        %v869 = vld [vmem:[%s853 + $0x3c] sm:$0xf]
        %v886 = vunpack.c.l.b16 %v854
        %v887 = vunpack.c.l.b16 %v855
        %v888 = vunpack.c.l.b16 %v856
        %v889 = vunpack.c.l.b16 %v857
        %v890 = vunpack.c.l.b16 %v858
        %v891 = vunpack.c.l.b16 %v859
        %v892 = vunpack.c.l.b16 %v860
        %v893 = vunpack.c.l.b16 %v861
        %v894 = vunpack.c.l.b16 %v862
        %v895 = vunpack.c.l.b16 %v863
        %v896 = vunpack.c.l.b16 %v864
        %v897 = vunpack.c.l.b16 %v865
        %v898 = vunpack.c.l.b16 %v866
        %v899 = vunpack.c.l.b16 %v867
        %v900 = vunpack.c.l.b16 %v868
        %v901 = vunpack.c.l.b16 %v869
        %v902 = vpack.c.b16 %v887, %v886
        %v903 = vpack.c.b16 %v889, %v888
        %v904 = vpack.c.b16 %v891, %v890
        %v905 = vpack.c.b16 %v893, %v892
        %v906 = vpack.c.b16 %v895, %v894
        %v907 = vpack.c.b16 %v897, %v896
        %v908 = vpack.c.b16 %v899, %v898
        %v909 = vpack.c.b16 %v901, %v900
        %918 = vmatpush.bf16.msra.mxu0 %v909
        %919 = vmatpush.bf16.msra.mxu0 %v908
        %920 = vmatpush.bf16.msra.mxu0 %v907
        %921 = vmatpush.bf16.msra.mxu0 %v906
        %922 = vmatpush.bf16.msra.mxu0 %v905
        %923 = vmatpush.bf16.msra.mxu0 %v904
        %924 = vmatpush.bf16.msra.mxu0 %v903
        %925 = vmatpush.bf16.msra.mxu0 %v902
        %926 = vmatmul.bf16.gmra.mxu0 %v837
        %v927 = vpop.f32.mrf.mxu0
        %v928 = vadd.f32 0.0, %v927
        %v929 = vpop.f32.mrf.mxu0
        %v930 = vadd.f32 0.0, %v929
        %931 = vmatmul.bf16.gmra.mxu0 %v838
        %v932 = vpop.f32.mrf.mxu0
        %v933 = vadd.f32 0.0, %v932
        %v934 = vpop.f32.mrf.mxu0
        %v935 = vadd.f32 0.0, %v934
        %936 = vmatmul.bf16.gmra.mxu0 %v839
        %v937 = vpop.f32.mrf.mxu0
        %v938 = vadd.f32 0.0, %v937
        %v939 = vpop.f32.mrf.mxu0
        %v940 = vadd.f32 0.0, %v939
        %941 = vmatmul.bf16.gmra.mxu0 %v840
        %v942 = vpop.f32.mrf.mxu0
        %v943 = vadd.f32 0.0, %v942
        %v944 = vpop.f32.mrf.mxu0
        %v945 = vadd.f32 0.0, %v944
        %946 = vmatmul.bf16.gmra.mxu0 %v841
        %v947 = vpop.f32.mrf.mxu0
        %v948 = vadd.f32 0.0, %v947
        %v949 = vpop.f32.mrf.mxu0
        %v950 = vadd.f32 0.0, %v949
        %951 = vmatmul.bf16.gmra.mxu0 %v842
        %v952 = vpop.f32.mrf.mxu0
        %v953 = vadd.f32 0.0, %v952
        %v954 = vpop.f32.mrf.mxu0
        %v955 = vadd.f32 0.0, %v954
        %956 = vmatmul.bf16.gmra.mxu0 %v843
        %v957 = vpop.f32.mrf.mxu0
        %v958 = vadd.f32 0.0, %v957
        %v959 = vpop.f32.mrf.mxu0
        %v960 = vadd.f32 0.0, %v959
        %961 = vmatmul.bf16.gmra.mxu0 %v844
        %v962 = vpop.f32.mrf.mxu0
        %v963 = vadd.f32 0.0, %v962
        %v964 = vpop.f32.mrf.mxu0
        %v965 = vadd.f32 0.0, %v964
        %966 = vmatmul.bf16.gmra.mxu0 %v845
        %v967 = vpop.f32.mrf.mxu0
        %v968 = vadd.f32 0.0, %v967
        %v969 = vpop.f32.mrf.mxu0
        %v970 = vadd.f32 0.0, %v969
        %971 = vmatmul.bf16.gmra.mxu0 %v846
        %v972 = vpop.f32.mrf.mxu0
        %v973 = vadd.f32 0.0, %v972
        %v974 = vpop.f32.mrf.mxu0
        %v975 = vadd.f32 0.0, %v974
        %976 = vmatmul.bf16.gmra.mxu0 %v847
        %v977 = vpop.f32.mrf.mxu0
        %v978 = vadd.f32 0.0, %v977
        %v979 = vpop.f32.mrf.mxu0
        %v980 = vadd.f32 0.0, %v979
        %981 = vmatmul.bf16.gmra.mxu0 %v848
        %v982 = vpop.f32.mrf.mxu0
        %v983 = vadd.f32 0.0, %v982
        %v984 = vpop.f32.mrf.mxu0
        %v985 = vadd.f32 0.0, %v984
        %986 = vmatmul.bf16.gmra.mxu0 %v849
        %v987 = vpop.f32.mrf.mxu0
        %v988 = vadd.f32 0.0, %v987
        %v989 = vpop.f32.mrf.mxu0
        %v990 = vadd.f32 0.0, %v989
        %991 = vmatmul.bf16.gmra.mxu0 %v850
        %v992 = vpop.f32.mrf.mxu0
        %v993 = vadd.f32 0.0, %v992
        %v994 = vpop.f32.mrf.mxu0
        %v995 = vadd.f32 0.0, %v994
        %996 = vmatmul.bf16.gmra.mxu0 %v851
        %v997 = vpop.f32.mrf.mxu0
        %v998 = vadd.f32 0.0, %v997
        %v999 = vpop.f32.mrf.mxu0
        %v1000 = vadd.f32 0.0, %v999
        %1001 = vmatmul.bf16.gmra.mxu0 %v852
        %v1002 = vpop.f32.mrf.mxu0
        %v1003 = vadd.f32 0.0, %v1002
        %v1004 = vpop.f32.mrf.mxu0
        %v1005 = vadd.f32 0.0, %v1004
        %1006 = vdwg.mxu0
        %v1007 = vadd.f32 %v726, %v928
        %v1008 = vadd.f32 %v728, %v930
        %v1009 = vadd.f32 %v731, %v933
        %v1010 = vadd.f32 %v733, %v935
        %v1011 = vadd.f32 %v736, %v938
        %v1012 = vadd.f32 %v738, %v940
        %v1013 = vadd.f32 %v741, %v943
        %v1014 = vadd.f32 %v743, %v945
        %v1015 = vadd.f32 %v746, %v948
        %v1016 = vadd.f32 %v748, %v950
        %v1017 = vadd.f32 %v751, %v953
        %v1018 = vadd.f32 %v753, %v955
        %v1019 = vadd.f32 %v756, %v958
        %v1020 = vadd.f32 %v758, %v960
        %v1021 = vadd.f32 %v761, %v963
        %v1022 = vadd.f32 %v763, %v965
        %v1023 = vadd.f32 %v766, %v968
        %v1024 = vadd.f32 %v768, %v970
        %v1025 = vadd.f32 %v771, %v973
        %v1026 = vadd.f32 %v773, %v975
        %v1027 = vadd.f32 %v776, %v978
        %v1028 = vadd.f32 %v778, %v980
        %v1029 = vadd.f32 %v781, %v983
        %v1030 = vadd.f32 %v783, %v985
        %v1031 = vadd.f32 %v786, %v988
        %v1032 = vadd.f32 %v788, %v990
        %v1033 = vadd.f32 %v791, %v993
        %v1034 = vadd.f32 %v793, %v995
        %v1035 = vadd.f32 %v796, %v998
        %v1036 = vadd.f32 %v798, %v1000
        %v1037 = vadd.f32 %v801, %v1003
        %v1038 = vadd.f32 %v803, %v1005
        %v1039 = vld [vmem:[%s4] sm:$0x1]
        %v1041 = vperm.slane %v1039, 0
        %v1043 = vadd.f32 %v1007, %v1041
        %v1044 = vadd.f32 %v1008, %v1041
        %v1045 = vadd.f32 %v1009, %v1041
        %v1046 = vadd.f32 %v1010, %v1041
        %v1047 = vadd.f32 %v1011, %v1041
        %v1048 = vadd.f32 %v1012, %v1041
        %v1049 = vadd.f32 %v1013, %v1041
        %v1050 = vadd.f32 %v1014, %v1041
        %v1051 = vadd.f32 %v1015, %v1041
        %v1052 = vadd.f32 %v1016, %v1041
        %v1053 = vadd.f32 %v1017, %v1041
        %v1054 = vadd.f32 %v1018, %v1041
        %v1055 = vadd.f32 %v1019, %v1041
        %v1056 = vadd.f32 %v1020, %v1041
        %v1057 = vadd.f32 %v1021, %v1041
        %v1058 = vadd.f32 %v1022, %v1041
        %v1059 = vadd.f32 %v1023, %v1041
        %v1060 = vadd.f32 %v1024, %v1041
        %v1061 = vadd.f32 %v1025, %v1041
        %v1062 = vadd.f32 %v1026, %v1041
        %v1063 = vadd.f32 %v1027, %v1041
        %v1064 = vadd.f32 %v1028, %v1041
        %v1065 = vadd.f32 %v1029, %v1041
        %v1066 = vadd.f32 %v1030, %v1041
        %v1067 = vadd.f32 %v1031, %v1041
        %v1068 = vadd.f32 %v1032, %v1041
        %v1069 = vadd.f32 %v1033, %v1041
        %v1070 = vadd.f32 %v1034, %v1041
        %v1071 = vadd.f32 %v1035, %v1041
        %v1072 = vadd.f32 %v1036, %v1041
        %v1073 = vadd.f32 %v1037, %v1041
        %v1074 = vadd.f32 %v1038, %v1041
        %v1075 = vmax.f32 %v1043, 0.0
        %v1076 = vmax.f32 %v1044, 0.0
        %v1077 = vmax.f32 %v1045, 0.0
        %v1078 = vmax.f32 %v1046, 0.0
        %v1079 = vmax.f32 %v1047, 0.0
        %v1080 = vmax.f32 %v1048, 0.0
        %v1081 = vmax.f32 %v1049, 0.0
        %v1082 = vmax.f32 %v1050, 0.0
        %v1083 = vmax.f32 %v1051, 0.0
        %v1084 = vmax.f32 %v1052, 0.0
        %v1085 = vmax.f32 %v1053, 0.0
        %v1086 = vmax.f32 %v1054, 0.0
        %v1087 = vmax.f32 %v1055, 0.0
        %v1088 = vmax.f32 %v1056, 0.0
        %v1089 = vmax.f32 %v1057, 0.0
        %v1090 = vmax.f32 %v1058, 0.0
        %v1091 = vmax.f32 %v1059, 0.0
        %v1092 = vmax.f32 %v1060, 0.0
        %v1093 = vmax.f32 %v1061, 0.0
        %v1094 = vmax.f32 %v1062, 0.0
        %v1095 = vmax.f32 %v1063, 0.0
        %v1096 = vmax.f32 %v1064, 0.0
        %v1097 = vmax.f32 %v1065, 0.0
        %v1098 = vmax.f32 %v1066, 0.0
        %v1099 = vmax.f32 %v1067, 0.0
        %v1100 = vmax.f32 %v1068, 0.0
        %v1101 = vmax.f32 %v1069, 0.0
        %v1102 = vmax.f32 %v1070, 0.0
        %v1103 = vmax.f32 %v1071, 0.0
        %v1104 = vmax.f32 %v1072, 0.0
        %v1105 = vmax.f32 %v1073, 0.0
        %v1106 = vmax.f32 %v1074, 0.0
        %v1107 = vpack.c.bf16 %v1076, %v1075
        %v1108 = vpack.c.bf16 %v1078, %v1077
        %v1109 = vpack.c.bf16 %v1080, %v1079
        %v1110 = vpack.c.bf16 %v1082, %v1081
        %v1111 = vpack.c.bf16 %v1084, %v1083
        %v1112 = vpack.c.bf16 %v1086, %v1085
        %v1113 = vpack.c.bf16 %v1088, %v1087
        %v1114 = vpack.c.bf16 %v1090, %v1089
        %v1115 = vpack.c.bf16 %v1092, %v1091
        %v1116 = vpack.c.bf16 %v1094, %v1093
        %v1117 = vpack.c.bf16 %v1096, %v1095
        %v1118 = vpack.c.bf16 %v1098, %v1097
        %v1119 = vpack.c.bf16 %v1100, %v1099
        %v1120 = vpack.c.bf16 %v1102, %v1101
        %v1121 = vpack.c.bf16 %v1104, %v1103
        %v1122 = vpack.c.bf16 %v1106, %v1105
        %1123 = vxpose.xlu0.c.b16.start [1/8] %v1107, 128
        %1124 = vxpose.xlu0.c.b16.cont [2/8] %v1108, 128
        %1125 = vxpose.xlu0.c.b16.cont [3/8] %v1109, 128
        %1126 = vxpose.xlu0.c.b16.cont [4/8] %v1110, 128
        %1127 = vxpose.xlu0.c.b16.cont [5/8] %v1111, 128
        %1128 = vxpose.xlu0.c.b16.cont [6/8] %v1112, 128
        %1129 = vxpose.xlu0.c.b16.cont [7/8] %v1113, 128
        %1130 = vxpose.xlu0.c.b16.end [8/8] %v1114, 128
        %v1131 = vpop.trf.xlu0
        %v1132 = vpop.trf.xlu0
        %v1133 = vpop.trf.xlu0
        %v1134 = vpop.trf.xlu0
        %v1135 = vpop.trf.xlu0
        %v1136 = vpop.trf.xlu0
        %v1137 = vpop.trf.xlu0
        %v1138 = vpop.trf.xlu0
        %1139 = vxpose.xlu0.c.b16.start [1/8] %v1115, 128
        %1140 = vxpose.xlu0.c.b16.cont [2/8] %v1116, 128
        %1141 = vxpose.xlu0.c.b16.cont [3/8] %v1117, 128
        %1142 = vxpose.xlu0.c.b16.cont [4/8] %v1118, 128
        %1143 = vxpose.xlu0.c.b16.cont [5/8] %v1119, 128
        %1144 = vxpose.xlu0.c.b16.cont [6/8] %v1120, 128
        %1145 = vxpose.xlu0.c.b16.cont [7/8] %v1121, 128
        %1146 = vxpose.xlu0.c.b16.end [8/8] %v1122, 128
        %v1147 = vpop.trf.xlu0
        %v1148 = vpop.trf.xlu0
        %v1149 = vpop.trf.xlu0
        %v1150 = vpop.trf.xlu0
        %v1151 = vpop.trf.xlu0
        %v1152 = vpop.trf.xlu0
        %v1153 = vpop.trf.xlu0
        %v1154 = vpop.trf.xlu0
        %v1155 = vld [vmem:[%s5] sm:$0xff]
        %v1156 = vld [vmem:[%s5 + $0x8] sm:$0xff]
        %v1157 = vld [vmem:[%s5 + $0x10] sm:$0xff]
        %v1158 = vld [vmem:[%s5 + $0x18] sm:$0xff]
        %v1159 = vld [vmem:[%s5 + $0x20] sm:$0xff]
        %v1160 = vld [vmem:[%s5 + $0x28] sm:$0xff]
        %v1161 = vld [vmem:[%s5 + $0x30] sm:$0xff]
        %v1162 = vld [vmem:[%s5 + $0x38] sm:$0xff]
        %v1163 = vld [vmem:[%s5 + $0x40] sm:$0xff]
        %v1164 = vld [vmem:[%s5 + $0x48] sm:$0xff]
        %v1165 = vld [vmem:[%s5 + $0x50] sm:$0xff]
        %v1166 = vld [vmem:[%s5 + $0x58] sm:$0xff]
        %v1167 = vld [vmem:[%s5 + $0x60] sm:$0xff]
        %v1168 = vld [vmem:[%s5 + $0x68] sm:$0xff]
        %v1169 = vld [vmem:[%s5 + $0x70] sm:$0xff]
        %v1170 = vld [vmem:[%s5 + $0x78] sm:$0xff]
        %v1171 = vunpack.c.l.bf16 %v1131
        %v1172 = vunpack.c.l.bf16 %v1147
        %v1173 = vunpack.c.h.bf16 %v1131
        %v1174 = vunpack.c.h.bf16 %v1147
        %v1175 = vunpack.c.l.bf16 %v1132
        %v1176 = vunpack.c.l.bf16 %v1148
        %v1177 = vunpack.c.h.bf16 %v1132
        %v1178 = vunpack.c.h.bf16 %v1148
        %v1179 = vunpack.c.l.bf16 %v1133
        %v1180 = vunpack.c.l.bf16 %v1149
        %v1181 = vunpack.c.h.bf16 %v1133
        %v1182 = vunpack.c.h.bf16 %v1149
        %v1183 = vunpack.c.l.bf16 %v1134
        %v1184 = vunpack.c.l.bf16 %v1150
        %v1185 = vunpack.c.h.bf16 %v1134
        %v1186 = vunpack.c.h.bf16 %v1150
        %v1187 = vunpack.c.l.bf16 %v1135
        %v1188 = vunpack.c.l.bf16 %v1151
        %v1189 = vunpack.c.h.bf16 %v1135
        %v1190 = vunpack.c.h.bf16 %v1151
        %v1191 = vunpack.c.l.bf16 %v1136
        %v1192 = vunpack.c.l.bf16 %v1152
        %v1193 = vunpack.c.h.bf16 %v1136
        %v1194 = vunpack.c.h.bf16 %v1152
        %v1195 = vunpack.c.l.bf16 %v1137
        %v1196 = vunpack.c.l.bf16 %v1153
        %v1197 = vunpack.c.h.bf16 %v1137
        %v1198 = vunpack.c.h.bf16 %v1153
        %v1199 = vunpack.c.l.bf16 %v1138
        %v1200 = vunpack.c.l.bf16 %v1154
        %v1201 = vunpack.c.h.bf16 %v1138
        %v1202 = vunpack.c.h.bf16 %v1154
        %1204 = vset.pattern.permute.xlu0 0
        %1205 = vperm.xlu0 %1204, %v1155
        %v1206 = vpop.permute.xlu0 %1205
        %1209 = vset.pattern.permute.xlu0 0
        %1210 = vperm.xlu0 %1209, %v1156
        %v1211 = vpop.permute.xlu0 %1210
        %1214 = vset.pattern.permute.xlu0 0
        %1215 = vperm.xlu0 %1214, %v1157
        %v1216 = vpop.permute.xlu0 %1215
        %1219 = vset.pattern.permute.xlu0 0
        %1220 = vperm.xlu0 %1219, %v1158
        %v1221 = vpop.permute.xlu0 %1220
        %1224 = vset.pattern.permute.xlu0 0
        %1225 = vperm.xlu0 %1224, %v1159
        %v1226 = vpop.permute.xlu0 %1225
        %1229 = vset.pattern.permute.xlu0 0
        %1230 = vperm.xlu0 %1229, %v1160
        %v1231 = vpop.permute.xlu0 %1230
        %1234 = vset.pattern.permute.xlu0 0
        %1235 = vperm.xlu0 %1234, %v1161
        %v1236 = vpop.permute.xlu0 %1235
        %1239 = vset.pattern.permute.xlu0 0
        %1240 = vperm.xlu0 %1239, %v1162
        %v1241 = vpop.permute.xlu0 %1240
        %1244 = vset.pattern.permute.xlu0 0
        %1245 = vperm.xlu0 %1244, %v1163
        %v1246 = vpop.permute.xlu0 %1245
        %1249 = vset.pattern.permute.xlu0 0
        %1250 = vperm.xlu0 %1249, %v1164
        %v1251 = vpop.permute.xlu0 %1250
        %1254 = vset.pattern.permute.xlu0 0
        %1255 = vperm.xlu0 %1254, %v1165
        %v1256 = vpop.permute.xlu0 %1255
        %1259 = vset.pattern.permute.xlu0 0
        %1260 = vperm.xlu0 %1259, %v1166
        %v1261 = vpop.permute.xlu0 %1260
        %1264 = vset.pattern.permute.xlu0 0
        %1265 = vperm.xlu0 %1264, %v1167
        %v1266 = vpop.permute.xlu0 %1265
        %1269 = vset.pattern.permute.xlu0 0
        %1270 = vperm.xlu0 %1269, %v1168
        %v1271 = vpop.permute.xlu0 %1270
        %1274 = vset.pattern.permute.xlu0 0
        %1275 = vperm.xlu0 %1274, %v1169
        %v1276 = vpop.permute.xlu0 %1275
        %1279 = vset.pattern.permute.xlu0 0
        %1280 = vperm.xlu0 %1279, %v1170
        %v1281 = vpop.permute.xlu0 %1280
        %v1283 = vmul.f32 %v1171, %v1206
        %v1284 = vmul.f32 %v1172, %v1206
        %v1285 = vmul.f32 %v1173, %v1211
        %v1286 = vmul.f32 %v1174, %v1211
        %v1287 = vmul.f32 %v1175, %v1216
        %v1288 = vmul.f32 %v1176, %v1216
        %v1289 = vmul.f32 %v1177, %v1221
        %v1290 = vmul.f32 %v1178, %v1221
        %v1291 = vmul.f32 %v1179, %v1226
        %v1292 = vmul.f32 %v1180, %v1226
        %v1293 = vmul.f32 %v1181, %v1231
        %v1294 = vmul.f32 %v1182, %v1231
        %v1295 = vmul.f32 %v1183, %v1236
        %v1296 = vmul.f32 %v1184, %v1236
        %v1297 = vmul.f32 %v1185, %v1241
        %v1298 = vmul.f32 %v1186, %v1241
        %v1299 = vmul.f32 %v1187, %v1246
        %v1300 = vmul.f32 %v1188, %v1246
        %v1301 = vmul.f32 %v1189, %v1251
        %v1302 = vmul.f32 %v1190, %v1251
        %v1303 = vmul.f32 %v1191, %v1256
        %v1304 = vmul.f32 %v1192, %v1256
        %v1305 = vmul.f32 %v1193, %v1261
        %v1306 = vmul.f32 %v1194, %v1261
        %v1307 = vmul.f32 %v1195, %v1266
        %v1308 = vmul.f32 %v1196, %v1266
        %v1309 = vmul.f32 %v1197, %v1271
        %v1310 = vmul.f32 %v1198, %v1271
        %v1311 = vmul.f32 %v1199, %v1276
        %v1312 = vmul.f32 %v1200, %v1276
        %v1313 = vmul.f32 %v1201, %v1281
        %v1314 = vmul.f32 %v1202, %v1281
        %v1315 = vadd.f32 %v1283, %v1285
        %v1316 = vadd.f32 %v1315, %v1287
        %v1317 = vadd.f32 %v1316, %v1289
        %v1318 = vadd.f32 %v1317, %v1291
        %v1319 = vadd.f32 %v1318, %v1293
        %v1320 = vadd.f32 %v1319, %v1295
        %v1321 = vadd.f32 %v1320, %v1297
        %v1322 = vadd.f32 %v1321, %v1299
        %v1323 = vadd.f32 %v1322, %v1301
        %v1324 = vadd.f32 %v1323, %v1303
        %v1325 = vadd.f32 %v1324, %v1305
        %v1326 = vadd.f32 %v1325, %v1307
        %v1327 = vadd.f32 %v1326, %v1309
        %v1328 = vadd.f32 %v1327, %v1311
        %v1329 = vadd.f32 %v1328, %v1313
        %v1330 = vrot.slane %v1329, 4
        %v1331 = vadd.f32 %v1329, %v1330
        %v1332 = vrot.slane %v1331, 2
        %v1333 = vadd.f32 %v1331, %v1332
        %v1334 = vrot.slane %v1333, 1
        %v1335 = vadd.f32 %v1333, %v1334
        %v1336 = vadd.f32 %v1284, %v1286
        %v1337 = vadd.f32 %v1336, %v1288
        %v1338 = vadd.f32 %v1337, %v1290
        %v1339 = vadd.f32 %v1338, %v1292
        %v1340 = vadd.f32 %v1339, %v1294
        %v1341 = vadd.f32 %v1340, %v1296
        %v1342 = vadd.f32 %v1341, %v1298
        %v1343 = vadd.f32 %v1342, %v1300
        %v1344 = vadd.f32 %v1343, %v1302
        %v1345 = vadd.f32 %v1344, %v1304
        %v1346 = vadd.f32 %v1345, %v1306
        %v1347 = vadd.f32 %v1346, %v1308
        %v1348 = vadd.f32 %v1347, %v1310
        %v1349 = vadd.f32 %v1348, %v1312
        %v1350 = vadd.f32 %v1349, %v1314
        %v1351 = vrot.slane %v1350, 4
        %v1352 = vadd.f32 %v1350, %v1351
        %v1353 = vrot.slane %v1352, 2
        %v1354 = vadd.f32 %v1352, %v1353
        %v1355 = vrot.slane %v1354, 1
        %v1356 = vadd.f32 %v1354, %v1355
        %s1357 = sld [smem:[#allocation2]]
        %v1358 = vstv %s1357
        %v1359 = vadd.f32 %v1335, %v1358
        %v1360 = vadd.f32 %v1356, %v1358
        %v1363 = vrot.slane %v1360, 7
        %vm1364 = vcmask 1040384
        %v1365 = vsel %vm1364, %v1359, %v1363
        %v1367 = vlaneseq
        %vm1368 = vcmp.ge.s32.totalorder %v1367, 0
        %vm1369 = vcmp.lt.s32.totalorder %v1367, 256
        %vm1370 = vmand %vm1368, %vm1369
        %1371 = vst.msk [vmem:[%s397] sm:$0x3] %vm1370, %v1365
        %s1372 = sand.u32 %s199, 1
        %s1373 = scalar_lea.sflag [#allocation5], %s1372
        %s1374 = sand.u32 %s199, 1
        %s1375 = smul.addr %s1374, 2
        %s1376 = scalar_lea.vmem [#allocation11], %s1375
        // Predicated region
        $region65: #{tpu_custom_call.1} parent=47 // pred_check
          %p1377 = pneg %p209
        $region66: #{tpu_custom_call.1} parent=47 // pred_check_branch
          %1379 = sbr.rel (%p1377) target = $region68
        $region67: #{tpu_custom_call.1} parent=47 // pred_region
          %s1380 = smul.u32 2, %s29
          %1382 = vsyncadd %s1373, 0
          %s1383 = scalar_lea.hbm %s7, %s1380
          %s1385 = sshll.u32 %s1376, 4
          %s1386 = int_to_ptr.vmem [resolvable:$true] %s1385
          %s1387 = sshll.u32 %s1383, 4
          %s1388 = int_to_ptr.hbm [resolvable:$true] %s1387
          %1390 = dma.vmem_to_hbm [thread:$0]  %s1386, 32, %s1388, %s1373
        $region68: #{tpu_custom_call.1} parent=47 // pred_fallthru
          _
      $region48: #{tpu_custom_call.1} parent=5 // pred_fallthru
        _
      %p1391 = scmp.le.s32.totalorder 2, %s24
      // Predicated region
      $region69: #{tpu_custom_call.1} parent=5 // pred_check
        %p1392 = pneg %p1391
      $region70: #{tpu_custom_call.1} parent=5 // pred_check_branch
        %1394 = sbr.rel (%p1392) target = $region72
      $region71: #{tpu_custom_call.1} parent=5 // pred_region
        %s1395 = ssub.s32 %s24, 2
        // Predicated region
        $region73: #{tpu_custom_call.1} parent=71 // pred_check
          %p1396 = pneg %p215
        $region74: #{tpu_custom_call.1} parent=71 // pred_check_branch
          %1398 = sbr.rel (%p1396) target = $region76
        $region75: #{tpu_custom_call.1} parent=71 // pred_region
          %s1399 = sand.u32 %s200, 1
          %s1400 = scalar_lea.sflag [#allocation5], %s1399
          %s1401 = sand.u32 %s200, 1
          %s1402 = smul.addr %s1401, 2
          %s1403 = scalar_lea.vmem [#allocation11], %s1402
          %1405 = dma.done %s1400, 32
        $region76: #{tpu_custom_call.1} parent=71 // pred_fallthru
          _
      $region72: #{tpu_custom_call.1} parent=5 // pred_fallthru
        _
    $region6: #{tpu_custom_call.1} parent=1 // loop_footer
      %s28 = sadd.s32 1, %s24
    $region7: #{tpu_custom_call.1} parent=1 // loop_footer_branch
      %23 = sbr.rel target = $region3
    $region8: #{tpu_custom_call.1} parent=1 // loop_exit
      _
    %1406 = vsyncpa [#allocation4], 1
    %s1407 = scalar_lea.sflag [#allocation4], 1
    %1408 = vsyncpa %s1407, 1
    %1409 = vsyncpa [#allocation7], 1
    %s1410 = scalar_lea.sflag [#allocation7], 1
    %1411 = vsyncpa %s1410, 1
    %1412 = vsyncpa [#allocation10], 1
    %1413 = vsyncpa [#allocation5], 1
    %s1414 = scalar_lea.sflag [#allocation5], 1
    %1415 = vsyncpa %s1414, 1

</llo_original>
